<compile_context>
chip_gen: v7x
topology: tpu7x:2x2x1
jax: 0.10.0
libtpu: 0.0.40
codegen_flags: <defaults>
</compile_context>

<pallas_src>
import jax
import jax.numpy as jnp
from jax.experimental import pallas as pl
from jax.experimental.pallas import tpu as pltpu

ALPHA = 0.25
GAMMA = 2.0
IGNORE_LB = 255

_TARGET_BLOCK_BYTES = 2 << 20   # ~2 MiB f32 compute block per grid step
_MIN_GRID_STEPS = 4             # keep both v7x TensorCores fed


def _vmem_limit_bytes():
    # v5e/v6e: 128 MiB physical -> raise the 16/32 MiB scoped default to 64 MiB.
    # v7x: 64 MiB physical -> stay at its 32 MiB scoped default.
    try:
        cap = getattr(pltpu.get_tpu_info(), "vmem_capacity_bytes", None)
        if cap:
            return int(min(cap // 2, 64 << 20))
    except Exception:
        pass
    return 32 << 20


def _select_spatial_tile(s, C, N, logits_dtype, label_dtype, block_rows=None):
    """Pick (rows_per_tile, num_tiles) for the (S, 128) spatial layout."""
    # Sublane-packing granule for a non-full second-minor block dim.
    gran = 8
    for dt in (logits_dtype, label_dtype):
        isz = jnp.dtype(dt).itemsize
        if isz == 2:
            gran = max(gran, 16)
        elif isz == 1:
            gran = max(gran, 32)

    # ~2 MiB f32 compute block; keeps temporaries well under v7x's scoped VMEM.
    target = max(gran, _TARGET_BLOCK_BYTES // (C * 128 * 4))
    if block_rows is not None:
        target = max(1, int(block_rows))

    # Prefer at least ~4 total grid steps (megacore on v7x).
    want_tiles = max(1, -(-_MIN_GRID_STEPS // max(N, 1)))
    split_rows = -(-s // want_tiles)

    ts = min(target, max(split_rows, gran))
    if ts >= s:
        return s, 1                       # full-extent tile: always layout-legal
    ts = max(gran, (ts // gran) * gran)
    if ts >= s:
        return s, 1
    return ts, -(-s // ts)


def _make_focal_kernel(ts, fold, s_valid, needs_bounds, alpha, gamma, ignore_lb):
    neg_alpha = 1.0 - alpha

    def kernel(logits_ref, label_ref, out_ref):
        # logits_ref: (1, C, ts, 128)  label_ref: (1, ts, 128)
        # out_ref:    (1, 1, 2, fold, 128)  row 0 = loss partials, row 1 = counts
        x = logits_ref[...].astype(jnp.float32)
        lbl = label_ref[...].astype(jnp.int32)

        ignore = lbl == ignore_lb
        if needs_bounds:
            # Tail tile may overrun S: mask by global row index, never by the
            # (garbage) label bytes that live past the end of the array.
            row = (jax.lax.broadcasted_iota(jnp.int32, lbl.shape, 1)
                   + pl.program_id(1) * ts)
            ignore = jnp.logical_or(ignore, row >= s_valid)

        lbl_clean = jnp.where(ignore, 0, lbl)                 # label[ignore] = 0
        ch = jax.lax.broadcasted_iota(jnp.int32, x.shape, 1)  # channel index
        m = ch == lbl_clean[:, None, :, :]                    # boolean one-hot

        # BCEWithLogitsLoss(reduction='none') with a shared exp(-|x|):
        #   ce = max(x,0) - x*onehot + log1p(exp(-|x|))
        # and pt = exp(-ce) == sigmoid-based pt (exact, no approx reciprocal).
        e = jnp.exp(-jnp.abs(x))                              # EUP
        log1pe = jnp.log1p(e)                                 # EUP
        ce = jnp.maximum(x, 0.0) - jnp.where(m, x, 0.0) + log1pe
        pt = jnp.exp(-ce)                                     # EUP
        q = 1.0 - pt
        if gamma == 2.0:
            w = q * q
        elif gamma == 1.0:
            w = q
        else:
            w = q ** gamma                                    # extra EUP (pow)
        focal = jnp.where(m, alpha, neg_alpha) * w * ce

        loss_pix = jnp.sum(focal, axis=1)[0]                  # (ts, 128), VALU adds
        loss_pix = jnp.where(ignore[0], 0.0, loss_pix)        # loss[ignore] = 0
        valid = jnp.where(ignore[0], 0.0, 1.0)                # (ts, 128)

        if fold == 8:
            # Fold rows into a full (8,128) vreg with pure VALU adds.
            lp = loss_pix.reshape(ts // 8, 8, 128).sum(axis=0)
            vp = valid.reshape(ts // 8, 8, 128).sum(axis=0)
        else:
            lp = jnp.sum(loss_pix, axis=0, keepdims=True)     # tiny tile fallback
            vp = jnp.sum(valid, axis=0, keepdims=True)

        out_ref[0, 0, 0] = lp
        out_ref[0, 0, 1] = vp

    return kernel


def focal_loss(logits, label, *, alpha=ALPHA, gamma=GAMMA, reduction="mean",
               ignore_lb=IGNORE_LB, block_rows=None):
    """logits: (N, C, H, W) float32/bfloat16; label: (N, H, W) integer."""
    N, C, H, W = logits.shape
    if label.shape != (N, H, W):
        raise ValueError("label must have shape (N, H, W)")

    # Keep labels narrow (uint8/uint16/int16/int32 pass straight through); only
    # widen when the dtype can't hold ignore_lb or isn't an integer type.
    if (not jnp.issubdtype(label.dtype, jnp.integer)
            or jnp.dtype(label.dtype).itemsize > 4
            or label.dtype == jnp.int8):
        label = label.astype(jnp.int32)

    hw = H * W
    s = -(-hw // 128)
    lg = logits.reshape(N, C, hw)
    lb = label.reshape(N, hw)
    if hw != s * 128:
        # TODO(synk): ragged H*W still costs one jnp.pad pass over the logits;
        # a flat (1, C, ts*128) block + lane-index masking would remove it.
        lg = jnp.pad(lg, ((0, 0), (0, 0), (0, s * 128 - hw)))
        lb = jnp.pad(lb, ((0, 0), (0, s * 128 - hw)), constant_values=ignore_lb)
    lg = lg.reshape(N, C, s, 128)     # free reshape when hw % 128 == 0
    lb = lb.reshape(N, s, 128)

    ts, num_t = _select_spatial_tile(s, C, N, lg.dtype, lb.dtype, block_rows)
    fold = 8 if ts % 8 == 0 else 1
    needs_bounds = num_t * ts > s

    kernel = _make_focal_kernel(ts=ts, fold=fold, s_valid=s,
                                needs_bounds=needs_bounds, alpha=float(alpha),
                                gamma=float(gamma), ignore_lb=int(ignore_lb))

    elems = N * C * num_t * ts * 128
    cost = pl.CostEstimate(
        flops=14 * elems,
        transcendentals=3 * elems,
        bytes_accessed=(lg.size * jnp.dtype(lg.dtype).itemsize
                        + lb.size * jnp.dtype(lb.dtype).itemsize
                        + N * num_t * 2 * fold * 128 * 4),
    )

    parts = pl.pallas_call(
        kernel,
        out_shape=jax.ShapeDtypeStruct((N, num_t, 2, fold, 128), jnp.float32),
        grid_spec=pltpu.PrefetchScalarGridSpec(
            num_scalar_prefetch=0,
            grid=(N, num_t),
            in_specs=[
                pl.BlockSpec((1, C, ts, 128), lambda n, t: (n, 0, t, 0)),
                pl.BlockSpec((1, ts, 128), lambda n, t: (n, t, 0)),
            ],
            out_specs=pl.BlockSpec((1, 1, 2, fold, 128),
                                   lambda n, t: (n, t, 0, 0, 0)),
        ),
        compiler_params=pltpu.CompilerParams(
            dimension_semantics=("parallel", "parallel"),
            vmem_limit_bytes=_vmem_limit_bytes(),
        ),
        cost_estimate=cost,
    )(lg, lb)

    loss_sum = jnp.sum(parts[:, :, 0])
    n_valid = jnp.sum(parts[:, :, 1])
    if reduction == "mean":
        # Matches torch semantics: an all-ignored batch divides by zero.
        return loss_sum / n_valid
    if reduction == "sum":
        return loss_sum
    # TODO(synk): reduction='none' needs a per-pixel (N, H, W) output map.
    raise NotImplementedError("only 'mean' and 'sum' reductions are supported")


def _focal_loss_ref(logits, label, reduction="mean", alpha=ALPHA, gamma=GAMMA,
                    ignore_lb=IGNORE_LB):
    # Pure-JAX reference mirroring the torch module.
    label = label.astype(jnp.int32)
    ignore = label == ignore_lb
    n_valid = jnp.sum(~ignore)
    lbl = jnp.where(ignore, 0, label)
    one_hot = jax.nn.one_hot(lbl, logits.shape[1], axis=1, dtype=jnp.float32)
    logits = logits.astype(jnp.float32)
    alpha_w = jnp.where(one_hot == 1.0, alpha, 1.0 - alpha)
    probs = jax.nn.sigmoid(logits)
    pt = jnp.where(one_hot == 1.0, probs, 1.0 - probs)
    ce = (jnp.maximum(logits, 0.0) - logits * one_hot
          + jnp.log1p(jnp.exp(-jnp.abs(logits))))
    loss = jnp.sum(alpha_w * (1.0 - pt) ** gamma * ce, axis=1)
    loss = jnp.where(ignore, 0.0, loss)
    if reduction == "mean":
        return jnp.sum(loss) / n_valid
    return jnp.sum(loss)


if __name__ == "__main__":
    key = jax.random.PRNGKey(0)
    k1, k2, k3, k4, k5 = jax.random.split(key, 5)

    # Case 1: f32 logits + int32 labels, N=2, C=4, 16x16 (H*W = 256 -> no pad).
    N, C, H, W = 2, 4, 16, 16
    logits = jax.random.normal(k1, (N, C, H, W), dtype=jnp.float32)
    label = jax.random.randint(k2, (N, H, W), 0, C, dtype=jnp.int32)
    ignore_mask = jax.random.bernoulli(k3, 0.1, (N, H, W))
    label = jnp.where(ignore_mask, IGNORE_LB, label)

    out = jax.block_until_ready(focal_loss(logits, label, reduction="mean"))
    ref = jax.block_until_ready(_focal_loss_ref(logits, label, reduction="mean"))
    assert jnp.allclose(out, ref, rtol=1e-3, atol=1e-4), (out, ref)

    out_s = jax.block_until_ready(focal_loss(logits, label, reduction="sum"))
    ref_s = jax.block_until_ready(_focal_loss_ref(logits, label, reduction="sum"))
    assert jnp.allclose(out_s, ref_s, rtol=1e-3, atol=1e-3), (out_s, ref_s)

    # Case 2: bf16 logits + uint8 labels consumed directly at the HBM boundary.
    out_b = jax.block_until_ready(
        focal_loss(logits.astype(jnp.bfloat16), label.astype(jnp.uint8)))
    ref_b = jax.block_until_ready(
        _focal_loss_ref(logits.astype(jnp.bfloat16), label))
    assert jnp.allclose(out_b, ref_b, rtol=2e-3, atol=1e-3), (out_b, ref_b)

    # Case 3: multi-tile grid with a ragged last tile (exercises the in-kernel
    # row-index mask and the (8,128) folded partial output path).
    N3, C3, H3, W3 = 1, 8, 40, 64                     # H*W = 2560 -> S = 20 rows
    logits3 = jax.random.normal(k4, (N3, C3, H3, W3), dtype=jnp.float32)
    label3 = jax.random.randint(k5, (N3, H3, W3), 0, C3, dtype=jnp.int32)
    label3 = jnp.where(jax.random.bernoulli(k3, 0.05, (N3, H3, W3)),
                       IGNORE_LB, label3)
    out3 = jax.block_until_ready(focal_loss(logits3, label3, block_rows=8))
    ref3 = jax.block_until_ready(_focal_loss_ref(logits3, label3))
    assert jnp.allclose(out3, ref3, rtol=1e-3, atol=1e-4), (out3, ref3)

    print("KERNEL_OK")
</pallas_src>

<mosaic_0001>
module attributes {stable_mosaic.version = 11 : i64} {
  func.func @kernel(%arg0: i32, %arg1: i32, %arg2: memref<1x4x2x128xf32, #tpu.memory_space<vmem>>, %arg3: memref<1x2x128xi32, #tpu.memory_space<vmem>>, %arg4: memref<1x1x2x1x128xf32, #tpu.memory_space<vmem>>) attributes {dimension_semantics = [#tpu.dimension_semantics<parallel>, #tpu.dimension_semantics<parallel>], iteration_bounds = array<i64: 2, 1>, scalar_prefetch = 0 : i64, scratch_operands = 0 : i64, tpu.core_type = #tpu.core_type<tc>, window_params = [{transform_indices = @transform_0, window_bounds = array<i64: 1, 4, 2, 128>}, {transform_indices = @transform_1, window_bounds = array<i64: 1, 2, 128>}, {transform_indices = @transform_2, window_bounds = array<i64: 1, 1, 2, 1, 128>}]} {
    %c0 = arith.constant 0 : index
    %c0_0 = arith.constant 0 : index
    %c0_1 = arith.constant 0 : index
    %c0_2 = arith.constant 0 : index
    %0 = vector.load %arg2[%c0, %c0_0, %c0_1, %c0_2] : memref<1x4x2x128xf32, #tpu.memory_space<vmem>>, vector<1x4x2x128xf32>
    %c0_3 = arith.constant 0 : index
    %c0_4 = arith.constant 0 : index
    %c0_5 = arith.constant 0 : index
    %1 = vector.load %arg3[%c0_3, %c0_4, %c0_5] : memref<1x2x128xi32, #tpu.memory_space<vmem>>, vector<1x2x128xi32>
    %c255_i32 = arith.constant 255 : i32
    %2 = vector.broadcast %c255_i32 : i32 to vector<1x2x128xi32>
    %3 = arith.cmpi eq, %1, %2 : vector<1x2x128xi32>
    %c0_i32 = arith.constant 0 : i32
    %4 = vector.broadcast %c0_i32 : i32 to vector<1x2x128xi32>
    %5 = arith.select %3, %4, %1 : vector<1x2x128xi1>, vector<1x2x128xi32>
    %6 = tpu.iota {dimensions = array<i32: 1>} : vector<1x4x2x128xi32>
    %7 = vector.shape_cast %5 : vector<1x2x128xi32> to vector<1x1x2x128xi32>
    %8 = vector.broadcast %7 : vector<1x1x2x128xi32> to vector<1x4x2x128xi32>
    %9 = arith.cmpi eq, %6, %8 : vector<1x4x2x128xi32>
    %10 = math.absf %0 : vector<1x4x2x128xf32>
    %cst = arith.constant 0.000000e+00 : f32
    %11 = vector.broadcast %cst : f32 to vector<1x4x2x128xf32>
    %12 = arith.subf %11, %10 : vector<1x4x2x128xf32>
    %13 = math.exp %12 : vector<1x4x2x128xf32>
    %14 = math.log1p %13 : vector<1x4x2x128xf32>
    %cst_6 = arith.constant 0.000000e+00 : f32
    %15 = vector.broadcast %cst_6 : f32 to vector<1x4x2x128xf32>
    %16 = arith.maximumf %0, %15 : vector<1x4x2x128xf32>
    %cst_7 = arith.constant 0.000000e+00 : f32
    %17 = vector.broadcast %cst_7 : f32 to vector<1x4x2x128xf32>
    %18 = arith.select %9, %0, %17 : vector<1x4x2x128xi1>, vector<1x4x2x128xf32>
    %19 = arith.subf %16, %18 : vector<1x4x2x128xf32>
    %20 = arith.addf %19, %14 : vector<1x4x2x128xf32>
    %cst_8 = arith.constant 0.000000e+00 : f32
    %21 = vector.broadcast %cst_8 : f32 to vector<1x4x2x128xf32>
    %22 = arith.subf %21, %20 : vector<1x4x2x128xf32>
    %23 = math.exp %22 : vector<1x4x2x128xf32>
    %cst_9 = arith.constant 1.000000e+00 : f32
    %24 = vector.broadcast %cst_9 : f32 to vector<1x4x2x128xf32>
    %25 = arith.subf %24, %23 : vector<1x4x2x128xf32>
    %26 = arith.mulf %25, %25 : vector<1x4x2x128xf32>
    %cst_10 = arith.constant 2.500000e-01 : f32
    %cst_11 = arith.constant 7.500000e-01 : f32
    %27 = vector.broadcast %cst_10 : f32 to vector<1x4x2x128xf32>
    %28 = vector.broadcast %cst_11 : f32 to vector<1x4x2x128xf32>
    %29 = arith.select %9, %27, %28 : vector<1x4x2x128xi1>, vector<1x4x2x128xf32>
    %30 = arith.mulf %29, %26 : vector<1x4x2x128xf32>
    %31 = arith.mulf %30, %20 : vector<1x4x2x128xf32>
    %cst_12 = arith.constant dense<0.000000e+00> : vector<1x2x128xf32>
    %32 = vector.multi_reduction <add>, %31, %cst_12 [1] : vector<1x4x2x128xf32> to vector<1x2x128xf32>
    %33 = vector.shape_cast %32 : vector<1x2x128xf32> to vector<2x128xf32>
    %34 = vector.shape_cast %3 : vector<1x2x128xi1> to vector<2x128xi1>
    %cst_13 = arith.constant 0.000000e+00 : f32
    %35 = vector.broadcast %cst_13 : f32 to vector<2x128xf32>
    %36 = arith.select %34, %35, %33 : vector<2x128xi1>, vector<2x128xf32>
    %37 = vector.shape_cast %3 : vector<1x2x128xi1> to vector<2x128xi1>
    %cst_14 = arith.constant 0.000000e+00 : f32
    %cst_15 = arith.constant 1.000000e+00 : f32
    %38 = vector.broadcast %cst_14 : f32 to vector<2x128xf32>
    %39 = vector.broadcast %cst_15 : f32 to vector<2x128xf32>
    %40 = arith.select %37, %38, %39 : vector<2x128xi1>, vector<2x128xf32>
    %cst_16 = arith.constant dense<0.000000e+00> : vector<128xf32>
    %41 = vector.multi_reduction <add>, %36, %cst_16 [0] : vector<2x128xf32> to vector<128xf32>
    %42 = vector.shape_cast %41 : vector<128xf32> to vector<1x128xf32>
    %cst_17 = arith.constant dense<0.000000e+00> : vector<128xf32>
    %43 = vector.multi_reduction <add>, %40, %cst_17 [0] : vector<2x128xf32> to vector<128xf32>
    %44 = vector.shape_cast %43 : vector<128xf32> to vector<1x128xf32>
    %c0_18 = arith.constant 0 : index
    %c0_19 = arith.constant 0 : index
    %c0_20 = arith.constant 0 : index
    %c0_21 = arith.constant 0 : index
    %c0_22 = arith.constant 0 : index
    %45 = vector.load %arg4[%c0_18, %c0_19, %c0_20, %c0_21, %c0_22] : memref<1x1x2x1x128xf32, #tpu.memory_space<vmem>>, vector<1x1x1x1x128xf32>
    %46 = vector.shape_cast %45 : vector<1x1x1x1x128xf32> to vector<1x128xf32>
    %47 = vector.shape_cast %42 : vector<1x128xf32> to vector<1x1x1x1x128xf32>
    tpu.vector_store %arg4[%c0_18, %c0_19, %c0_20, %c0_21, %c0_22], %47 {strides = array<i32>} : memref<1x1x2x1x128xf32, #tpu.memory_space<vmem>>, vector<1x1x1x1x128xf32>,
    %c0_23 = arith.constant 0 : index
    %c0_24 = arith.constant 0 : index
    %c1 = arith.constant 1 : index
    %c0_25 = arith.constant 0 : index
    %c0_26 = arith.constant 0 : index
    %48 = vector.load %arg4[%c0_23, %c0_24, %c1, %c0_25, %c0_26] : memref<1x1x2x1x128xf32, #tpu.memory_space<vmem>>, vector<1x1x1x1x128xf32>
    %49 = vector.shape_cast %48 : vector<1x1x1x1x128xf32> to vector<1x128xf32>
    %50 = vector.shape_cast %44 : vector<1x128xf32> to vector<1x1x1x1x128xf32>
    tpu.vector_store %arg4[%c0_23, %c0_24, %c1, %c0_25, %c0_26], %50 {strides = array<i32>} : memref<1x1x2x1x128xf32, #tpu.memory_space<vmem>>, vector<1x1x1x1x128xf32>,
    return
  }
  func.func @transform_0(%arg0: i32, %arg1: i32) -> (i32, i32, i32, i32) {
    %c0_i32 = arith.constant 0 : i32
    %c0_i32_0 = arith.constant 0 : i32
    %c0_i32_1 = arith.constant 0 : i32
    return %arg0, %c0_i32, %arg1, %c0_i32_0 : i32, i32, i32, i32
  }
  func.func @transform_1(%arg0: i32, %arg1: i32) -> (i32, i32, i32) {
    %c0_i32 = arith.constant 0 : i32
    %c0_i32_0 = arith.constant 0 : i32
    return %arg0, %arg1, %c0_i32 : i32, i32, i32
  }
  func.func @transform_2(%arg0: i32, %arg1: i32) -> (i32, i32, i32, i32, i32) {
    %c0_i32 = arith.constant 0 : i32
    %c0_i32_0 = arith.constant 0 : i32
    %c0_i32_1 = arith.constant 0 : i32
    %c0_i32_2 = arith.constant 0 : i32
    return %arg0, %arg1, %c0_i32, %c0_i32_0, %c0_i32_1 : i32, i32, i32, i32, i32
  }
}

</mosaic_0001>

<llo_original>
// kernel: tpu_custom_call.1
$region0: #{tpu_custom_call.1}
  #allocation0 [shape = 'u32[]', space=smem, size = 0x4, offset = 0x4, fixed_abs, tag = 'smem constant byte address 0x4 - core index']
  #allocation1 [shape = 'u32[144,128]{1,0:T(1,128)}', space=vmem, size = 0x12000, scoped, tag = 'internal scratch']
  %s0 = inlined_call_operand.hbm [shape: f32[2,4,2,128], index: 0, kind: input, shape index: {}]
  %s1 = inlined_call_operand.hbm [shape: s32[2,2,128], index: 1, kind: input, shape index: {}]
  %s2 = inlined_call_operand.hbm [shape: f32[2,1,2,1,128], index: 2, kind: output, shape index: {}]
  %s3 = sld [smem:[#allocation0]]
  $region49: #{tpu_custom_call.1} parent=0
    _
  %s5 = ssub.s32 1, %s3
  %s6 = scalar_select 0, %s5, %s3
  $region1: #{tpu_custom_call.1} parent=0
    #allocation2 [shape = 'u8[8192]{0}', space=vmem, size = 0x2000, scoped, tag = 'input window, operand 0']
    #allocation3 [shape = 's32[2]{0}', space=sflag, size = 0x8, scoped, tag = 'scoped memory for tpu_custom_call.1']
    #allocation4 [shape = 's32[2]{0}', space=sflag, size = 0x8, scoped, tag = 'scoped memory for tpu_custom_call.1']
    #allocation5 [shape = 'u8[2048]{0}', space=vmem, size = 0x800, scoped, tag = 'input window, operand 1']
    #allocation6 [shape = 's32[2]{0}', space=sflag, size = 0x8, scoped, tag = 'scoped memory for tpu_custom_call.1']
    #allocation7 [shape = 'u8[2048]{0}', space=vmem, size = 0x800, scoped, tag = 'output window, operand 0']
    %7 = vsyncpa [#allocation3], 0
    %s8 = scalar_lea.sflag [#allocation3], 1
    %9 = vsyncpa %s8, 0
    %10 = vsyncpa [#allocation6], 0
    %s11 = scalar_lea.sflag [#allocation6], 1
    %12 = vsyncpa %s11, 0
    %13 = vsyncpa [#allocation4], 0
    %s14 = scalar_lea.sflag [#allocation4], 1
    %15 = vsyncpa %s14, 0
    loop: start=0, step=1, limit=4
    $region2: #{tpu_custom_call.1} parent=1 // loop_pre_header
      _
    $region3: #{tpu_custom_call.1} parent=1 // loop_header
      %s17 = sphi 0, %s21
      %p18 = scmp.ge.s32.totalorder %s17, 4
      %s24 = sphi 0, %s36
      %s25 = sphi 0, %s32
      %s26 = sphi 0, %s24
      %s27 = sphi 0, %s25
      %s28 = sphi 0, %s26
      %s29 = sphi 0, %s27
      %s41 = sphi 0, %s43
      %s44 = sphi 0, %s41
      %s45 = sphi 0, %s44
      %s61 = sphi 0, %s45
      %s69 = sphi 0, %s71
      %s72 = sphi 0, %s69
      %s73 = sphi 0, %s72
      %s89 = sphi 0, %s73
      %s97 = sphi 0, %s99
      %s100 = sphi 0, %s97
      %s101 = sphi 0, %s100
      %s117 = sphi 0, %s101
    $region4: #{tpu_custom_call.1} parent=1 // loop_header_branch
      %20 = sbr.rel (%p18) target = $region8
    $region5: #{tpu_custom_call.1} parent=1 // loop_body
      %s22 = ssub.s32 %s17, 1
      %s23 = ssub.s32 %s17, 2
      %s30 = sadd.s32 1, %s25
      %p31 = scmp.ge.s32.totalorder %s30, 1
      %s32 = scalar_select %p31, 0, %s30
      %s33 = sadd.s32 1, %s24
      %s34 = scalar_select %p31, %s33, %s24
      %p35 = scmp.ge.s32.totalorder %s34, 2
      %s36 = scalar_select %p35, 0, %s34
      %s37 = ssub.s32 %s24, %s36
      %s38 = ssub.s32 %s25, %s32
      %s39 = sor.u32 %s37, %s38
      %p40 = scmp.eq.s32.totalorder %s39, 0
      %s42 = sadd.s32 %s41, 1
      %s43 = scalar_select %p40, %s41, %s42
      %p46 = pneg %p40
      %p47 = scmp.eq.s32.totalorder %s17, 1
      %p48 = por %p46, %p47
      %p49 = scmp.ne.s32.totalorder %s41, %s44
      %p50 = scmp.eq.s32.totalorder %s17, 0
      %p51 = por %p49, %p50
      %p52 = scmp.ne.s32.totalorder %s41, %s44
      %p53 = scmp.eq.s32.totalorder %s22, 1
      %p54 = por %p52, %p53
      %p55 = scmp.ne.s32.totalorder %s44, %s45
      %p56 = scmp.eq.s32.totalorder %s22, 0
      %p57 = por %p55, %p56
      %p58 = scmp.ne.s32.totalorder %s44, %s45
      %p59 = scmp.eq.s32.totalorder %s23, 1
      %p60 = por %p58, %p59
      %p62 = scmp.ne.s32.totalorder %s45, %s61
      %p63 = scmp.eq.s32.totalorder %s23, 0
      %p64 = por %p62, %p63
      %s65 = ssub.s32 %s24, %s36
      %s66 = ssub.s32 %s25, %s32
      %s67 = sor.u32 %s65, %s66
      %p68 = scmp.eq.s32.totalorder %s67, 0
      %s70 = sadd.s32 %s69, 1
      %s71 = scalar_select %p68, %s69, %s70
      %p74 = pneg %p68
      %p75 = scmp.eq.s32.totalorder %s17, 1
      %p76 = por %p74, %p75
      %p77 = scmp.ne.s32.totalorder %s69, %s72
      %p78 = scmp.eq.s32.totalorder %s17, 0
      %p79 = por %p77, %p78
      %p80 = scmp.ne.s32.totalorder %s69, %s72
      %p81 = scmp.eq.s32.totalorder %s22, 1
      %p82 = por %p80, %p81
      %p83 = scmp.ne.s32.totalorder %s72, %s73
      %p84 = scmp.eq.s32.totalorder %s22, 0
      %p85 = por %p83, %p84
      %p86 = scmp.ne.s32.totalorder %s72, %s73
      %p87 = scmp.eq.s32.totalorder %s23, 1
      %p88 = por %p86, %p87
      %p90 = scmp.ne.s32.totalorder %s73, %s89
      %p91 = scmp.eq.s32.totalorder %s23, 0
      %p92 = por %p90, %p91
      %s93 = ssub.s32 %s24, %s36
      %s94 = ssub.s32 %s25, %s32
      %s95 = sor.u32 %s93, %s94
      %p96 = scmp.eq.s32.totalorder %s95, 0
      %s98 = sadd.s32 %s97, 1
      %s99 = scalar_select %p96, %s97, %s98
      %p102 = pneg %p96
      %p103 = scmp.eq.s32.totalorder %s17, 1
      %p104 = por %p102, %p103
      %p105 = scmp.ne.s32.totalorder %s97, %s100
      %p106 = scmp.eq.s32.totalorder %s17, 0
      %p107 = por %p105, %p106
      %p108 = scmp.ne.s32.totalorder %s97, %s100
      %p109 = scmp.eq.s32.totalorder %s22, 1
      %p110 = por %p108, %p109
      %p111 = scmp.ne.s32.totalorder %s100, %s101
      %p112 = scmp.eq.s32.totalorder %s22, 0
      %p113 = por %p111, %p112
      %p114 = scmp.ne.s32.totalorder %s100, %s101
      %p115 = scmp.eq.s32.totalorder %s23, 1
      %p116 = por %p114, %p115
      %p118 = scmp.ne.s32.totalorder %s101, %s117
      %p119 = scmp.eq.s32.totalorder %s23, 0
      %p120 = por %p118, %p119
      %p121 = scmp.le.s32.totalorder 1, %s17
      %p122 = scmp.lt.s32.totalorder %s17, 3
      %p123 = pnand %p121, %p122
      %p124 = pneg %p123
      // Predicated region
      $region9: #{tpu_custom_call.1} parent=5 // pred_check
        _
      $region10: #{tpu_custom_call.1} parent=5 // pred_check_branch
        %126 = sbr.rel (%p123) target = $region12
      $region11: #{tpu_custom_call.1} parent=5 // pred_region
        %s127 = ssub.s32 %s17, 1
      $region12: #{tpu_custom_call.1} parent=5 // pred_fallthru
        _
      %p128 = scmp.lt.s32.totalorder %s17, 2
      // Predicated region
      $region13: #{tpu_custom_call.1} parent=5 // pred_check
        %p129 = pneg %p128
      $region14: #{tpu_custom_call.1} parent=5 // pred_check_branch
        %131 = sbr.rel (%p129) target = $region16
      $region15: #{tpu_custom_call.1} parent=5 // pred_region
        // Predicated region
        $region17: #{tpu_custom_call.1} parent=15 // pred_check
          %p132 = pneg %p51
        $region18: #{tpu_custom_call.1} parent=15 // pred_check_branch
          %134 = sbr.rel (%p132) target = $region20
        $region19: #{tpu_custom_call.1} parent=15 // pred_region
          %s135 = sand.u32 %s41, 1
          %s136 = scalar_lea.sflag [#allocation3], %s135
          %s137 = sand.u32 %s41, 1
          %s138 = smul.addr %s137, 8
          %s139 = scalar_lea.vmem [#allocation2], %s138
          %s141 = ssub.s32 128, 128
          %142 = vsyncadd %s136, %s141
          %s143 = smul.addr %s24, 4
          %s144 = sadd.s32 %s25, %s143
          %s145 = smul.addr %s144, 32
          %s146 = scalar_lea.hbm %s0, %s145
          %s147 = sshll.u32 %s139, 4
          %s148 = int_to_ptr.vmem [resolvable:$true] %s147
          %153 = dma.hbm_to_vmem [thread:$0]  %s146, 128, %s148, %s136, 32, 32, 2
        $region20: #{tpu_custom_call.1} parent=15 // pred_fallthru
          _
        // Predicated region
        $region21: #{tpu_custom_call.1} parent=15 // pred_check
          %p154 = pneg %p79
        $region22: #{tpu_custom_call.1} parent=15 // pred_check_branch
          %156 = sbr.rel (%p154) target = $region24
        $region23: #{tpu_custom_call.1} parent=15 // pred_region
          %s157 = sand.u32 %s69, 1
          %s158 = scalar_lea.sflag [#allocation6], %s157
          %s159 = sand.u32 %s69, 1
          %s160 = smul.addr %s159, 2
          %s161 = scalar_lea.vmem [#allocation5], %s160
          %s163 = ssub.s32 32, 32
          %164 = vsyncadd %s158, %s163
          %s165 = sadd.s32 %s25, %s24
          %s166 = smul.addr %s165, 32
          %s167 = scalar_lea.hbm %s1, %s166
          %s169 = sshll.u32 %s161, 4
          %s170 = int_to_ptr.vmem [resolvable:$true] %s169
          %172 = dma.hbm_to_vmem [thread:$0]  %s167, 32, %s170, %s158
        $region24: #{tpu_custom_call.1} parent=15 // pred_fallthru
          _
      $region16: #{tpu_custom_call.1} parent=5 // pred_fallthru
        _
      %p173 = scmp.le.s32.totalorder 1, %s17
      %p174 = scmp.lt.s32.totalorder %s17, 3
      %p175 = pnand %p173, %p174
      %p176 = pneg %p175
      // Predicated region
      $region25: #{tpu_custom_call.1} parent=5 // pred_check
        _
      $region26: #{tpu_custom_call.1} parent=5 // pred_check_branch
        %178 = sbr.rel (%p175) target = $region28
      $region27: #{tpu_custom_call.1} parent=5 // pred_region
        %s179 = ssub.s32 %s17, 1
        %s180 = sand.u32 %s44, 1
        %s181 = scalar_lea.sflag [#allocation3], %s180
        %s182 = sand.u32 %s44, 1
        %s183 = smul.addr %s182, 8
        %s184 = scalar_lea.vmem [#allocation2], %s183
        // Predicated region
        $region29: #{tpu_custom_call.1} parent=27 // pred_check
          %p185 = pneg %p57
        $region30: #{tpu_custom_call.1} parent=27 // pred_check_branch
          %187 = sbr.rel (%p185) target = $region32
        $region31: #{tpu_custom_call.1} parent=27 // pred_region
          %188 = dma.done %s181, 128
        $region32: #{tpu_custom_call.1} parent=27 // pred_fallthru
          _
        %s189 = sand.u32 %s72, 1
        %s190 = scalar_lea.sflag [#allocation6], %s189
        %s191 = sand.u32 %s72, 1
        %s192 = smul.addr %s191, 2
        %s193 = scalar_lea.vmem [#allocation5], %s192
        // Predicated region
        $region33: #{tpu_custom_call.1} parent=27 // pred_check
          %p194 = pneg %p85
        $region34: #{tpu_custom_call.1} parent=27 // pred_check_branch
          %196 = sbr.rel (%p194) target = $region36
        $region35: #{tpu_custom_call.1} parent=27 // pred_region
          %197 = dma.done %s190, 32
        $region36: #{tpu_custom_call.1} parent=27 // pred_fallthru
          _
        %s198 = sand.u32 %s44, 1
        %s199 = scalar_lea.sflag [#allocation3], %s198
        %s200 = sand.u32 %s44, 1
        %s201 = smul.addr %s200, 8
        %s202 = scalar_lea.vmem [#allocation2], %s201
        %p203 = pneg %p57
        %p204 = pneg %p54
        %s205 = sand.u32 %s72, 1
        %s206 = scalar_lea.sflag [#allocation6], %s205
        %s207 = sand.u32 %s72, 1
        %s208 = smul.addr %s207, 2
        %s209 = scalar_lea.vmem [#allocation5], %s208
        %p210 = pneg %p85
        %p211 = pneg %p82
        %p212 = pneg %p113
        %p213 = pneg %p110
        %s214 = sand.u32 %s100, 1
        %s215 = scalar_lea.sflag [#allocation4], %s214
        %s216 = sand.u32 %s100, 1
        %s217 = smul.addr %s216, 2
        %s218 = scalar_lea.vmem [#allocation7], %s217
        %v219 = vld [vmem:[%s184] sm:$0x3]
        %v220 = vld [vmem:[%s184 + $0x2] sm:$0x3]
        %v221 = vld [vmem:[%s184 + $0x4] sm:$0x3]
        %v222 = vld [vmem:[%s184 + $0x6] sm:$0x3]
        %v223 = vld [vmem:[%s193] sm:$0x3]
        %vm224 = vcmp.eq.s32.totalorder %v223, 255
        %v225 = vsel %vm224, 0, %v223
        %vm226 = vcmp.eq.s32.totalorder %v225, 0
        %vm227 = vcmp.eq.s32.totalorder %v225, 1
        %vm228 = vcmp.eq.s32.totalorder %v225, 2
        %vm229 = vcmp.eq.s32.totalorder %v225, 3
        %v230 = vand.u32 2147483647, %v219
        %v231 = vand.u32 2147483647, %v220
        %v232 = vand.u32 2147483647, %v221
        %v233 = vand.u32 2147483647, %v222
        %v234 = vsub.f32 0.0, %v230
        %v235 = vsub.f32 0.0, %v231
        %v236 = vsub.f32 0.0, %v232
        %v237 = vsub.f32 0.0, %v233
        %v238 = vmul.f32 %v234, 1.442695
        %v239 = vpow.pop %v238
        %v240 = vmul.f32 %v235, 1.442695
        %v241 = vpow.pop %v240
        %v242 = vmul.f32 %v236, 1.442695
        %v243 = vpow.pop %v242
        %v244 = vmul.f32 %v237, 1.442695
        %v245 = vpow.pop %v244
        %v246 = vadd.f32 %v239, 1.0
        %v247 = vlog2.pop %v246
        %v248 = vmul.f32 %v247, 0.6931472
        %v249 = vmul.f32 -0.5, %v239
        %v250 = vadd.f32 %v249, 1.0
        %v251 = vmul.f32 %v250, %v239
        %v252 = vand.u32 2147483647, %v239
        %vm253 = vcmp.lt.f32.partialorder %v252, 0.0004427343
        %v254 = vsel %vm253, %v251, %v248
        %v255 = vadd.f32 %v241, 1.0
        %v256 = vlog2.pop %v255
        %v257 = vmul.f32 %v256, 0.6931472
        %v258 = vmul.f32 -0.5, %v241
        %v259 = vadd.f32 %v258, 1.0
        %v260 = vmul.f32 %v259, %v241
        %v261 = vand.u32 2147483647, %v241
        %vm262 = vcmp.lt.f32.partialorder %v261, 0.0004427343
        %v263 = vsel %vm262, %v260, %v257
        %v264 = vadd.f32 %v243, 1.0
        %v265 = vlog2.pop %v264
        %v266 = vmul.f32 %v265, 0.6931472
        %v267 = vmul.f32 -0.5, %v243
        %v268 = vadd.f32 %v267, 1.0
        %v269 = vmul.f32 %v268, %v243
        %v270 = vand.u32 2147483647, %v243
        %vm271 = vcmp.lt.f32.partialorder %v270, 0.0004427343
        %v272 = vsel %vm271, %v269, %v266
        %v273 = vadd.f32 %v245, 1.0
        %v274 = vlog2.pop %v273
        %v275 = vmul.f32 %v274, 0.6931472
        %v276 = vmul.f32 -0.5, %v245
        %v277 = vadd.f32 %v276, 1.0
        %v278 = vmul.f32 %v277, %v245
        %v279 = vand.u32 2147483647, %v245
        %vm280 = vcmp.lt.f32.partialorder %v279, 0.0004427343
        %v281 = vsel %vm280, %v278, %v275
        %v282 = vmax.f32 %v219, 0.0
        %v283 = vmax.f32 %v220, 0.0
        %v284 = vmax.f32 %v221, 0.0
        %v285 = vmax.f32 %v222, 0.0
        %v286 = vsel %vm226, %v219, 0.0
        %v287 = vsel %vm227, %v220, 0.0
        %v288 = vsel %vm228, %v221, 0.0
        %v289 = vsel %vm229, %v222, 0.0
        %v290 = vsub.f32 %v282, %v286
        %v291 = vsub.f32 %v283, %v287
        %v292 = vsub.f32 %v284, %v288
        %v293 = vsub.f32 %v285, %v289
        %v294 = vadd.f32 %v290, %v254
        %v295 = vadd.f32 %v291, %v263
        %v296 = vadd.f32 %v292, %v272
        %v297 = vadd.f32 %v293, %v281
        %v298 = vsub.f32 0.0, %v294
        %v299 = vsub.f32 0.0, %v295
        %v300 = vsub.f32 0.0, %v296
        %v301 = vsub.f32 0.0, %v297
        %v302 = vmul.f32 %v298, 1.442695
        %v303 = vpow.pop %v302
        %v304 = vmul.f32 %v299, 1.442695
        %v305 = vpow.pop %v304
        %v306 = vmul.f32 %v300, 1.442695
        %v307 = vpow.pop %v306
        %v308 = vmul.f32 %v301, 1.442695
        %v309 = vpow.pop %v308
        %v310 = vsub.f32 1.0, %v303
        %v311 = vsub.f32 1.0, %v305
        %v312 = vsub.f32 1.0, %v307
        %v313 = vsub.f32 1.0, %v309
        %v314 = vmul.f32 %v310, %v310
        %v315 = vmul.f32 %v311, %v311
        %v316 = vmul.f32 %v312, %v312
        %v317 = vmul.f32 %v313, %v313
        %v318 = vsel %vm226, 0.25, 0.75
        %v319 = vsel %vm227, 0.25, 0.75
        %v320 = vsel %vm228, 0.25, 0.75
        %v321 = vsel %vm229, 0.25, 0.75
        %v322 = vmul.f32 %v318, %v314
        %v323 = vmul.f32 %v319, %v315
        %v324 = vmul.f32 %v320, %v316
        %v325 = vmul.f32 %v321, %v317
        %v326 = vmul.f32 %v322, %v294
        %v327 = vmul.f32 %v323, %v295
        %v328 = vmul.f32 %v324, %v296
        %v329 = vmul.f32 %v325, %v297
        %vm330 = vcmask 1041408
        %v331 = vsel %vm330, %v326, 0.0
        %v332 = vsel %vm330, %v327, 0.0
        %v333 = vadd.f32 %v331, %v332
        %v334 = vsel %vm330, %v328, 0.0
        %v335 = vadd.f32 %v333, %v334
        %v336 = vsel %vm330, %v329, 0.0
        %v337 = vadd.f32 %v335, %v336
        %v338 = vsel %vm224, 0.0, %v337
        %v339 = vsel %vm224, 0.0, 1.0
        %v340 = vsel %vm330, %v338, 0.0
        %v341 = vrot.slane %v340, 4
        %v342 = vadd.f32 %v340, %v341
        %v343 = vrot.slane %v342, 2
        %v344 = vadd.f32 %v342, %v343
        %v345 = vrot.slane %v344, 1
        %v346 = vadd.f32 %v344, %v345
        %v347 = vsel %vm330, %v339, 0.0
        %v348 = vrot.slane %v347, 4
        %v349 = vadd.f32 %v347, %v348
        %v350 = vrot.slane %v349, 2
        %v351 = vadd.f32 %v349, %v350
        %v352 = vrot.slane %v351, 1
        %v353 = vadd.f32 %v351, %v352
        %354 = vst [vmem:[%s218] sm:$0x1] %v346
        %s355 = scalar_lea.vmem %s218, 1 [#allocation7]
        %356 = vst [vmem:[%s355] sm:$0x1] %v353
        %s357 = sand.u32 %s100, 1
        %s358 = scalar_lea.sflag [#allocation4], %s357
        %s359 = sand.u32 %s100, 1
        %s360 = smul.addr %s359, 2
        %s361 = scalar_lea.vmem [#allocation7], %s360
        // Predicated region
        $region37: #{tpu_custom_call.1} parent=27 // pred_check
          %p362 = pneg %p110
        $region38: #{tpu_custom_call.1} parent=27 // pred_check_branch
          %364 = sbr.rel (%p362) target = $region40
        $region39: #{tpu_custom_call.1} parent=27 // pred_region
          %s366 = ssub.s32 32, 32
          %367 = vsyncadd %s358, %s366
          %s368 = smul.addr %s27, 2
          %s369 = smul.addr %s26, 2
          %s370 = sadd.s32 %s368, %s369
          %s371 = smul.addr %s370, 16
          %s372 = scalar_lea.hbm %s2, %s371
          %s373 = sshll.u32 %s361, 4
          %s374 = int_to_ptr.vmem [resolvable:$true] %s373
          %379 = dma.vmem_to_hbm [thread:$0]  %s374, 32, %s372, %s358, 16, 16, 1
        $region40: #{tpu_custom_call.1} parent=27 // pred_fallthru
          _
      $region28: #{tpu_custom_call.1} parent=5 // pred_fallthru
        _
      %p380 = scmp.le.s32.totalorder 2, %s17
      // Predicated region
      $region41: #{tpu_custom_call.1} parent=5 // pred_check
        %p381 = pneg %p380
      $region42: #{tpu_custom_call.1} parent=5 // pred_check_branch
        %383 = sbr.rel (%p381) target = $region44
      $region43: #{tpu_custom_call.1} parent=5 // pred_region
        %s384 = ssub.s32 %s17, 2
        // Predicated region
        $region45: #{tpu_custom_call.1} parent=43 // pred_check
          %p385 = pneg %p116
        $region46: #{tpu_custom_call.1} parent=43 // pred_check_branch
          %387 = sbr.rel (%p385) target = $region48
        $region47: #{tpu_custom_call.1} parent=43 // pred_region
          %s388 = sand.u32 %s101, 1
          %s389 = scalar_lea.sflag [#allocation4], %s388
          %s390 = sand.u32 %s101, 1
          %s391 = smul.addr %s390, 2
          %s392 = scalar_lea.vmem [#allocation7], %s391
          %393 = dma.done %s389, 32
        $region48: #{tpu_custom_call.1} parent=43 // pred_fallthru
          _
      $region44: #{tpu_custom_call.1} parent=5 // pred_fallthru
        _
    $region6: #{tpu_custom_call.1} parent=1 // loop_footer
      %s21 = sadd.s32 1, %s17
    $region7: #{tpu_custom_call.1} parent=1 // loop_footer_branch
      %16 = sbr.rel target = $region3
    $region8: #{tpu_custom_call.1} parent=1 // loop_exit
      _
    %394 = vsyncpa [#allocation3], 1
    %s395 = scalar_lea.sflag [#allocation3], 1
    %396 = vsyncpa %s395, 1
    %397 = vsyncpa [#allocation6], 1
    %s398 = scalar_lea.sflag [#allocation6], 1
    %399 = vsyncpa %s398, 1
    %400 = vsyncpa [#allocation4], 1
    %s401 = scalar_lea.sflag [#allocation4], 1
    %402 = vsyncpa %s401, 1

</llo_original>
